<compile_context>
chip_gen: v5e
topology: v5e:2x2
jax: 0.10.0
libtpu: 0.0.40
codegen_flags: <defaults>
</compile_context>

<pallas_src>
import jax
import jax.numpy as jnp
from jax import lax
from jax.experimental import pallas as pl
from jax.experimental.pallas import tpu as pltpu


def _round_up(x, m):
    return (x + m - 1) // m * m


def dynamic_conv2d_pallas(x, params, *, kernel_size, padding=0, stride=1,
                          dilation=1, K=4, groups=1):
    # TODO(synk): groups > 1 (grouped dynamic conv) is not implemented; groups == 1 only.
    assert groups == 1, "groups > 1 not supported"
    B, C, H, W = x.shape
    O = params["weight"].shape[1]
    KS = kernel_size
    d = dilation
    Hp, Wp = H + 2 * padding, W + 2 * padding
    # True (strided) output size, matching F.conv2d.
    Ho = (H + 2 * padding - d * (KS - 1) - 1) // stride + 1
    Wo = (W + 2 * padding - d * (KS - 1) - 1) // stride + 1
    # Dense (stride-1) output the kernel computes; wrapper subsamples for stride > 1.
    Ho_d = Hp - d * (KS - 1)
    Wo_d = Wp - d * (KS - 1)

    Cpad = _round_up(C, 8)              # sublane-aligned tap row groups in col_ref
    CK2 = KS * KS * Cpad                # im2col contraction dim (8-aligned groups)
    Lo = Ho_d * Wp                      # lane-dense output columns per output row
    Lx = Hp * Wp + d * (KS - 1)         # flattened input + tail so every tap slice fits

    f32 = jnp.float32

    # ---------------- wrapper-side attention + aggregation (plain XLA) ------------
    pooled = jnp.mean(x.astype(f32), axis=(2, 3))                       # (B, C)
    a1 = jax.nn.relu(pooled @ params["fc1_w"].T + params["fc1_b"])      # (B, K)
    a2 = a1 @ params["fc2_w"].T + params["fc2_b"]                       # (B, K)
    attn = jax.nn.softmax(a2, axis=1)                                   # (B, K)

    # (B, K) @ (K, O*C*KS*KS) -> (B, O, C, KS, KS) -> (B, O, KS, KS, Cpad) -> (B, O, CK2)
    # Contraction index (kh*KS + kw)*Cpad + c matches the im2col row layout below.
    agg_w = (attn @ params["weight"].reshape(K, -1)).reshape(B, O, C, KS, KS)
    agg_w = jnp.transpose(agg_w, (0, 1, 3, 4, 2))
    agg_w = jnp.pad(agg_w, ((0, 0), (0, 0), (0, 0), (0, 0), (0, Cpad - C)))
    agg_w = agg_w.reshape(B, O, CK2).astype(f32)
    agg_b = (attn @ params["bias"]).reshape(B, O, 1).astype(f32)        # (B, O, 1)

    # Flattened, zero-padded input: (B, Cpad, Hp*Wp + tail).  Channel pad to Cpad
    # makes every im2col tap fill a full 8-row aligned store; padded channels are
    # zero and meet zero agg_w columns, so they do not change the result.
    # TODO(synk): on v5e fold the spatial zero-pad into the kernel (zero col_ref
    #             once, copy only valid sub-rows) to save one full HBM pass over x.
    x_pad = jnp.pad(x.astype(f32),
                    ((0, 0), (0, Cpad - C), (padding, padding), (padding, padding)))
    x_flat = x_pad.reshape(B, Cpad, Hp * Wp)
    x_flat = jnp.pad(x_flat, ((0, 0), (0, 0), (0, Lx - Hp * Wp)))

    # ---------------- batch tiling --------------------------------------------------
    itemsize = 4
    col_bytes = CK2 * Lo * itemsize

    def per_step_bytes(bt):
        # double-buffered in/out blocks + single-buffered col scratch
        return 2 * itemsize * bt * (Cpad * Lx + O * CK2 + O + O * Lo) + col_bytes

    # Keep a parallel grid of extent >= 2 when B >= 2 (v7x has 2 TensorCores) while
    # packing B//2 batch elements per step to amortize per-step pipeline overhead.
    Bt = 1
    for cand in range(max(1, B // 2), 0, -1):
        if B % cand == 0 and per_step_bytes(cand) <= (40 << 20):
            Bt = cand
            break
    grid = (B // Bt,)
    # TODO(synk): for B == 1 (inference) add a parallel axis over O tiles or Ho-row
    #             tiles (with a d*(KS-1) row halo) so v7x's second TC has work.
    vmem_limit = int(min(60 << 20, max(16 << 20, 2 * per_step_bytes(Bt))))

    # ---------------- kernel --------------------------------------------------------
    def kernel(x_ref, aw_ref, ab_ref, o_ref, col_ref):
        # x_ref:   (Bt, Cpad, Lx)   flattened zero-padded image(s)
        # aw_ref:  (Bt, O, CK2)     per-batch aggregated weights (im2col order)
        # ab_ref:  (Bt, O, 1)       per-batch aggregated bias
        # o_ref:   (Bt, O, Lo)      dense stride-1 output, lane-dense (Wp cols/row)
        # col_ref: (CK2, Lo)        im2col scratch, 8-row groups per conv tap
        for bi in range(Bt):
            # Flat-slice im2col: each tap is one contiguous lane-offset copy of a
            # full 8-aligned sublane group — no reshapes, no masked stores.
            for kh in range(KS):
                for kw in range(KS):
                    tap = kh * KS + kw
                    off = (kh * Wp + kw) * d
                    col_ref[tap * Cpad:(tap + 1) * Cpad, :] = \
                        x_ref[bi, :, off:off + Lo]
            # One fused MXU matmul: (O, CK2) @ (CK2, Lo), then the bias add.
            # TODO(synk): at real C/O sizes cast both operands to bf16 (keeping
            #             preferred_element_type=f32) and tile O / Lo to 256
            #             multiples for v6e/v7x MXU rate and VMEM headroom.
            out = jnp.dot(aw_ref[bi], col_ref[...],
                          preferred_element_type=jnp.float32)
            out = out + ab_ref[bi]
            o_ref[bi] = out.astype(o_ref.dtype)

    cost = pl.CostEstimate(
        flops=2 * B * O * CK2 * Lo
              + 2 * B * (K * C + K * K + K * O * C * KS * KS + K * O),
        transcendentals=B * K,
        bytes_accessed=itemsize * (B * Cpad * Lx + B * O * CK2 + B * O
                                   + B * O * Lo),
    )

    out_dense = pl.pallas_call(
        kernel,
        out_shape=jax.ShapeDtypeStruct((B, O, Lo), x.dtype),
        grid=grid,
        in_specs=[
            pl.BlockSpec((Bt, Cpad, Lx), lambda b: (b, 0, 0)),
            pl.BlockSpec((Bt, O, CK2), lambda b: (b, 0, 0)),
            pl.BlockSpec((Bt, O, 1), lambda b: (b, 0, 0)),
        ],
        out_specs=pl.BlockSpec((Bt, O, Lo), lambda b: (b, 0, 0)),
        scratch_shapes=[pltpu.VMEM((CK2, Lo), jnp.float32)],
        compiler_params=pltpu.CompilerParams(
            dimension_semantics=("parallel",),
            vmem_limit_bytes=vmem_limit,
        ),
        cost_estimate=cost,
    )(x_flat, agg_w, agg_b)

    # Drop the Wo_d..Wp-1 garbage columns, subsample for stride > 1.
    out = out_dense.reshape(B, O, Ho_d, Wp)[:, :, :, :Wo_d]
    if stride > 1:
        # TODO(synk): stride>1 computes the dense stride-1 output and subsamples in
        #             the wrapper; a strided (sublane pl.ds) im2col would avoid the
        #             wasted columns for large strides.
        out = out[:, :, ::stride, ::stride]
    return out[:, :, :Ho, :Wo]


def dynamic_conv2d_ref(x, params, *, kernel_size, padding=0, stride=1,
                       dilation=1, K=4):
    """Plain-JAX reference mirroring the PyTorch forward pass."""
    B, C, H, W = x.shape
    O = params["weight"].shape[1]
    pooled = x.mean(axis=(2, 3))                                    # (B, C)
    a1 = jax.nn.relu(pooled @ params["fc1_w"].T + params["fc1_b"])
    a2 = a1 @ params["fc2_w"].T + params["fc2_b"]
    attn = jax.nn.softmax(a2, axis=1)                               # (B, K)
    agg_w = (attn @ params["weight"].reshape(K, -1)).reshape(
        B * O, C, kernel_size, kernel_size)
    agg_b = (attn @ params["bias"]).reshape(-1)                     # (B*O,)
    x_r = x.reshape(1, B * C, H, W)
    out = lax.conv_general_dilated(
        x_r, agg_w, window_strides=(stride, stride),
        padding=[(padding, padding), (padding, padding)],
        rhs_dilation=(dilation, dilation),
        feature_group_count=B)
    out = out + agg_b[None, :, None, None]
    return out.reshape(B, O, out.shape[-2], out.shape[-1])


if __name__ == "__main__":
    key = jax.random.PRNGKey(0)
    B, C, O, KS, K = 2, 4, 8, 3, 4
    H = W = 16
    PAD = 1

    ks = jax.random.split(key, 7)

    def xavier(k, shape, fan_in, fan_out):
        bound = (6.0 / (fan_in + fan_out)) ** 0.5
        return jax.random.uniform(k, shape, jnp.float32, -bound, bound)

    params = {
        "fc1_w": xavier(ks[0], (K, C), C, K),                      # Conv2d(C, K, 1)
        "fc1_b": jax.random.uniform(ks[1], (K,), jnp.float32, -0.1, 0.1),
        "fc2_w": xavier(ks[2], (K, K), K, K),                      # Conv2d(K, K, 1)
        "fc2_b": jax.random.uniform(ks[3], (K,), jnp.float32, -0.1, 0.1),
        "weight": xavier(ks[4], (K, O, C, KS, KS), C * KS * KS, O * KS * KS),
        "bias": xavier(ks[5], (K, O), K, O),
    }
    x = jax.random.normal(ks[6], (B, C, H, W), jnp.float32)

    out = dynamic_conv2d_pallas(x, params, kernel_size=KS, padding=PAD, K=K)
    out = jax.block_until_ready(out)

    ref = dynamic_conv2d_ref(x, params, kernel_size=KS, padding=PAD, K=K)
    assert out.shape == (B, O, H, W), out.shape
    max_err = float(jnp.max(jnp.abs(out - ref)))
    assert jnp.allclose(out, ref, atol=1e-4, rtol=1e-4), max_err
    print("KERNEL_OK")
</pallas_src>

<mosaic_0001>
module attributes {stable_mosaic.version = 11 : i64} {
  func.func @kernel(%arg0: i32, %arg1: memref<1x8x326xf32, #tpu.memory_space<vmem>>, %arg2: memref<1x8x72xf32, #tpu.memory_space<vmem>>, %arg3: memref<1x8x1xf32, #tpu.memory_space<vmem>>, %arg4: memref<1x8x288xf32, #tpu.memory_space<vmem>>, %arg5: memref<72x288xf32, #tpu.memory_space<vmem>>) attributes {dimension_semantics = [#tpu.dimension_semantics<parallel>], iteration_bounds = array<i64: 2>, scalar_prefetch = 0 : i64, scratch_operands = 1 : i64, tpu.core_type = #tpu.core_type<tc>, window_params = [{transform_indices = @transform_0, window_bounds = array<i64: 1, 8, 326>}, {transform_indices = @transform_1, window_bounds = array<i64: 1, 8, 72>}, {transform_indices = @transform_2, window_bounds = array<i64: 1, 8, 1>}, {transform_indices = @transform_3, window_bounds = array<i64: 1, 8, 288>}]} {
    %c0 = arith.constant 0 : index
    %c0_0 = arith.constant 0 : index
    %c0_1 = arith.constant 0 : index
    %0 = vector.load %arg1[%c0, %c0_0, %c0_1] : memref<1x8x326xf32, #tpu.memory_space<vmem>>, vector<1x8x288xf32>
    %1 = vector.shape_cast %0 : vector<1x8x288xf32> to vector<8x288xf32>
    %c0_2 = arith.constant 0 : index
    %c0_3 = arith.constant 0 : index
    %2 = vector.load %arg5[%c0_2, %c0_3] : memref<72x288xf32, #tpu.memory_space<vmem>>, vector<8x288xf32>
    tpu.vector_store %arg5[%c0_2, %c0_3], %1 {strides = array<i32>} : memref<72x288xf32, #tpu.memory_space<vmem>>, vector<8x288xf32>,
    %c0_4 = arith.constant 0 : index
    %c0_5 = arith.constant 0 : index
    %c1 = arith.constant 1 : index
    %3 = vector.load %arg1[%c0_4, %c0_5, %c1] : memref<1x8x326xf32, #tpu.memory_space<vmem>>, vector<1x8x288xf32>
    %4 = vector.shape_cast %3 : vector<1x8x288xf32> to vector<8x288xf32>
    %c8 = arith.constant 8 : index
    %c0_6 = arith.constant 0 : index
    %5 = vector.load %arg5[%c8, %c0_6] : memref<72x288xf32, #tpu.memory_space<vmem>>, vector<8x288xf32>
    tpu.vector_store %arg5[%c8, %c0_6], %4 {strides = array<i32>} : memref<72x288xf32, #tpu.memory_space<vmem>>, vector<8x288xf32>,
    %c0_7 = arith.constant 0 : index
    %c0_8 = arith.constant 0 : index
    %c2 = arith.constant 2 : index
    %6 = vector.load %arg1[%c0_7, %c0_8, %c2] : memref<1x8x326xf32, #tpu.memory_space<vmem>>, vector<1x8x288xf32>
    %7 = vector.shape_cast %6 : vector<1x8x288xf32> to vector<8x288xf32>
    %c16 = arith.constant 16 : index
    %c0_9 = arith.constant 0 : index
    %8 = vector.load %arg5[%c16, %c0_9] : memref<72x288xf32, #tpu.memory_space<vmem>>, vector<8x288xf32>
    tpu.vector_store %arg5[%c16, %c0_9], %7 {strides = array<i32>} : memref<72x288xf32, #tpu.memory_space<vmem>>, vector<8x288xf32>,
    %c0_10 = arith.constant 0 : index
    %c0_11 = arith.constant 0 : index
    %c18 = arith.constant 18 : index
    %9 = vector.load %arg1[%c0_10, %c0_11, %c18] : memref<1x8x326xf32, #tpu.memory_space<vmem>>, vector<1x8x288xf32>
    %10 = vector.shape_cast %9 : vector<1x8x288xf32> to vector<8x288xf32>
    %c24 = arith.constant 24 : index
    %c0_12 = arith.constant 0 : index
    %11 = vector.load %arg5[%c24, %c0_12] : memref<72x288xf32, #tpu.memory_space<vmem>>, vector<8x288xf32>
    tpu.vector_store %arg5[%c24, %c0_12], %10 {strides = array<i32>} : memref<72x288xf32, #tpu.memory_space<vmem>>, vector<8x288xf32>,
    %c0_13 = arith.constant 0 : index
    %c0_14 = arith.constant 0 : index
    %c19 = arith.constant 19 : index
    %12 = vector.load %arg1[%c0_13, %c0_14, %c19] : memref<1x8x326xf32, #tpu.memory_space<vmem>>, vector<1x8x288xf32>
    %13 = vector.shape_cast %12 : vector<1x8x288xf32> to vector<8x288xf32>
    %c32 = arith.constant 32 : index
    %c0_15 = arith.constant 0 : index
    %14 = vector.load %arg5[%c32, %c0_15] : memref<72x288xf32, #tpu.memory_space<vmem>>, vector<8x288xf32>
    tpu.vector_store %arg5[%c32, %c0_15], %13 {strides = array<i32>} : memref<72x288xf32, #tpu.memory_space<vmem>>, vector<8x288xf32>,
    %c0_16 = arith.constant 0 : index
    %c0_17 = arith.constant 0 : index
    %c20 = arith.constant 20 : index
    %15 = vector.load %arg1[%c0_16, %c0_17, %c20] : memref<1x8x326xf32, #tpu.memory_space<vmem>>, vector<1x8x288xf32>
    %16 = vector.shape_cast %15 : vector<1x8x288xf32> to vector<8x288xf32>
    %c40 = arith.constant 40 : index
    %c0_18 = arith.constant 0 : index
    %17 = vector.load %arg5[%c40, %c0_18] : memref<72x288xf32, #tpu.memory_space<vmem>>, vector<8x288xf32>
    tpu.vector_store %arg5[%c40, %c0_18], %16 {strides = array<i32>} : memref<72x288xf32, #tpu.memory_space<vmem>>, vector<8x288xf32>,
    %c0_19 = arith.constant 0 : index
    %c0_20 = arith.constant 0 : index
    %c36 = arith.constant 36 : index
    %18 = vector.load %arg1[%c0_19, %c0_20, %c36] : memref<1x8x326xf32, #tpu.memory_space<vmem>>, vector<1x8x288xf32>
    %19 = vector.shape_cast %18 : vector<1x8x288xf32> to vector<8x288xf32>
    %c48 = arith.constant 48 : index
    %c0_21 = arith.constant 0 : index
    %20 = vector.load %arg5[%c48, %c0_21] : memref<72x288xf32, #tpu.memory_space<vmem>>, vector<8x288xf32>
    tpu.vector_store %arg5[%c48, %c0_21], %19 {strides = array<i32>} : memref<72x288xf32, #tpu.memory_space<vmem>>, vector<8x288xf32>,
    %c0_22 = arith.constant 0 : index
    %c0_23 = arith.constant 0 : index
    %c37 = arith.constant 37 : index
    %21 = vector.load %arg1[%c0_22, %c0_23, %c37] : memref<1x8x326xf32, #tpu.memory_space<vmem>>, vector<1x8x288xf32>
    %22 = vector.shape_cast %21 : vector<1x8x288xf32> to vector<8x288xf32>
    %c56 = arith.constant 56 : index
    %c0_24 = arith.constant 0 : index
    %23 = vector.load %arg5[%c56, %c0_24] : memref<72x288xf32, #tpu.memory_space<vmem>>, vector<8x288xf32>
    tpu.vector_store %arg5[%c56, %c0_24], %22 {strides = array<i32>} : memref<72x288xf32, #tpu.memory_space<vmem>>, vector<8x288xf32>,
    %c0_25 = arith.constant 0 : index
    %c0_26 = arith.constant 0 : index
    %c38 = arith.constant 38 : index
    %24 = vector.load %arg1[%c0_25, %c0_26, %c38] : memref<1x8x326xf32, #tpu.memory_space<vmem>>, vector<1x8x288xf32>
    %25 = vector.shape_cast %24 : vector<1x8x288xf32> to vector<8x288xf32>
    %c64 = arith.constant 64 : index
    %c0_27 = arith.constant 0 : index
    %26 = vector.load %arg5[%c64, %c0_27] : memref<72x288xf32, #tpu.memory_space<vmem>>, vector<8x288xf32>
    tpu.vector_store %arg5[%c64, %c0_27], %25 {strides = array<i32>} : memref<72x288xf32, #tpu.memory_space<vmem>>, vector<8x288xf32>,
    %c0_28 = arith.constant 0 : index
    %c0_29 = arith.constant 0 : index
    %c0_30 = arith.constant 0 : index
    %27 = vector.load %arg2[%c0_28, %c0_29, %c0_30] : memref<1x8x72xf32, #tpu.memory_space<vmem>>, vector<1x8x72xf32>
    %28 = vector.shape_cast %27 : vector<1x8x72xf32> to vector<8x72xf32>
    %c0_31 = arith.constant 0 : index
    %c0_32 = arith.constant 0 : index
    %29 = vector.load %arg5[%c0_31, %c0_32] : memref<72x288xf32, #tpu.memory_space<vmem>>, vector<72x288xf32>
    %cst = arith.constant dense<0.000000e+00> : vector<8x288xf32>
    %30 = tpu.matmul %28, %29, %cst {dimension_numbers = #tpu.dot_dimension_numbers<[1], [0], [0], [1], [0, 0, 1, 1], [], []>} : vector<8x72xf32>, vector<72x288xf32>, vector<8x288xf32> -> vector<8x288xf32>
    %c0_33 = arith.constant 0 : index
    %c0_34 = arith.constant 0 : index
    %c0_35 = arith.constant 0 : index
    %31 = vector.load %arg3[%c0_33, %c0_34, %c0_35] : memref<1x8x1xf32, #tpu.memory_space<vmem>>, vector<1x8x1xf32>
    %32 = vector.shape_cast %31 : vector<1x8x1xf32> to vector<8x1xf32>
    %33 = vector.broadcast %32 : vector<8x1xf32> to vector<8x288xf32>
    %34 = arith.addf %30, %33 : vector<8x288xf32>
    %c0_36 = arith.constant 0 : index
    %c0_37 = arith.constant 0 : index
    %c0_38 = arith.constant 0 : index
    %35 = vector.load %arg4[%c0_36, %c0_37, %c0_38] : memref<1x8x288xf32, #tpu.memory_space<vmem>>, vector<1x8x288xf32>
    %36 = vector.shape_cast %35 : vector<1x8x288xf32> to vector<8x288xf32>
    %37 = vector.shape_cast %34 : vector<8x288xf32> to vector<1x8x288xf32>
    tpu.vector_store %arg4[%c0_36, %c0_37, %c0_38], %37 {strides = array<i32>} : memref<1x8x288xf32, #tpu.memory_space<vmem>>, vector<1x8x288xf32>,
    return
  }
  func.func @transform_0(%arg0: i32) -> (i32, i32, i32) {
    %c0_i32 = arith.constant 0 : i32
    %c0_i32_0 = arith.constant 0 : i32
    %c0_i32_1 = arith.constant 0 : i32
    return %arg0, %c0_i32, %c0_i32_0 : i32, i32, i32
  }
  func.func @transform_1(%arg0: i32) -> (i32, i32, i32) {
    %c0_i32 = arith.constant 0 : i32
    %c0_i32_0 = arith.constant 0 : i32
    %c0_i32_1 = arith.constant 0 : i32
    return %arg0, %c0_i32, %c0_i32_0 : i32, i32, i32
  }
  func.func @transform_2(%arg0: i32) -> (i32, i32, i32) {
    %c0_i32 = arith.constant 0 : i32
    %c0_i32_0 = arith.constant 0 : i32
    %c0_i32_1 = arith.constant 0 : i32
    return %arg0, %c0_i32, %c0_i32_0 : i32, i32, i32
  }
  func.func @transform_3(%arg0: i32) -> (i32, i32, i32) {
    %c0_i32 = arith.constant 0 : i32
    %c0_i32_0 = arith.constant 0 : i32
    %c0_i32_1 = arith.constant 0 : i32
    return %arg0, %c0_i32, %c0_i32_0 : i32, i32, i32
  }
}

</mosaic_0001>

<llo_original>
// kernel: tpu_custom_call.1
$region0: #{tpu_custom_call.1}
  #allocation0 [shape = 'u32[]', space=smem, size = 0x4, offset = 0x4, fixed_abs, tag = 'smem constant byte address 0x4 - core index']
  #allocation1 [shape = 'u32[72,128]{1,0:T(1,128)}', space=vmem, size = 0x9000, scoped, tag = 'internal scratch']
  #allocation2 [shape = 'f32[72,288]{1,0:T(8,128)}', space=vmem, size = 0x1b000, scoped, tag = 'scratch operand']
  %s0 = inlined_call_operand.hbm [shape: f32[2,8,326], index: 0, kind: input, shape index: {}]
  %s1 = inlined_call_operand.vmem [shape: f32[2,8,72], index: 1, kind: input, shape index: {}]
  %s2 = inlined_call_operand.vmem [shape: f32[2,8,1], index: 2, kind: input, shape index: {}]
  %s3 = inlined_call_operand.hbm [shape: f32[2,8,288], index: 3, kind: output, shape index: {}]
  %s4 = sld [smem:[#allocation0]]
  $region49: #{tpu_custom_call.1} parent=0
    _
  %s6 = ssub.s32 1, %s4
  %s7 = scalar_select 0, %s6, %s4
  $region1: #{tpu_custom_call.1} parent=0
    #allocation3 [shape = 'u8[24576]{0}', space=vmem, size = 0x6000, scoped, tag = 'input window, operand 0']
    #allocation4 [shape = 's32[2]{0}', space=sflag, size = 0x8, scoped, tag = 'scoped memory for tpu_custom_call.1']
    #allocation5 [shape = 's32[2]{0}', space=sflag, size = 0x8, scoped, tag = 'scoped memory for tpu_custom_call.1']
    #allocation6 [shape = 'u8[24576]{0}', space=vmem, size = 0x6000, scoped, tag = 'output window, operand 0']
    %8 = vsyncpa [#allocation4], 0
    %s9 = scalar_lea.sflag [#allocation4], 1
    %10 = vsyncpa %s9, 0
    %11 = vsyncpa [#allocation5], 0
    %s12 = scalar_lea.sflag [#allocation5], 1
    %13 = vsyncpa %s12, 0
    loop: start=0, step=1, limit=4
    $region2: #{tpu_custom_call.1} parent=1 // loop_pre_header
      _
    $region3: #{tpu_custom_call.1} parent=1 // loop_header
      %s15 = sphi 0, %s19
      %p16 = scmp.ge.s32.totalorder %s15, 4
      %s25 = sphi 0, %s27
      %s28 = sphi 0, %s25
      %s29 = sphi 0, %s28
      %s45 = sphi 0, %s29
      %s51 = sphi 0, %s53
      %s54 = sphi 0, %s51
      %s55 = sphi 0, %s54
      %s71 = sphi 0, %s55
      %s77 = sphi 0, %s79
      %s80 = sphi 0, %s77
      %s81 = sphi 0, %s80
      %s97 = sphi 0, %s81
      %s103 = sphi 0, %s105
      %s106 = sphi 0, %s103
      %s107 = sphi 0, %s106
      %s123 = sphi 0, %s107
    $region4: #{tpu_custom_call.1} parent=1 // loop_header_branch
      %18 = sbr.rel (%p16) target = $region8
    $region5: #{tpu_custom_call.1} parent=1 // loop_body
      %s20 = ssub.s32 %s15, 1
      %s21 = ssub.s32 %s15, 2
      %s22 = sadd.s32 %s15, 1
      %s23 = ssub.s32 %s15, %s22
      %p24 = scmp.eq.s32.totalorder %s23, 0
      %s26 = sadd.s32 %s25, 1
      %s27 = scalar_select %p24, %s25, %s26
      %p30 = pneg %p24
      %p31 = scmp.eq.s32.totalorder %s15, 1
      %p32 = por %p30, %p31
      %p33 = scmp.ne.s32.totalorder %s25, %s28
      %p34 = scmp.eq.s32.totalorder %s15, 0
      %p35 = por %p33, %p34
      %p36 = scmp.ne.s32.totalorder %s25, %s28
      %p37 = scmp.eq.s32.totalorder %s20, 1
      %p38 = por %p36, %p37
      %p39 = scmp.ne.s32.totalorder %s28, %s29
      %p40 = scmp.eq.s32.totalorder %s20, 0
      %p41 = por %p39, %p40
      %p42 = scmp.ne.s32.totalorder %s28, %s29
      %p43 = scmp.eq.s32.totalorder %s21, 1
      %p44 = por %p42, %p43
      %p46 = scmp.ne.s32.totalorder %s29, %s45
      %p47 = scmp.eq.s32.totalorder %s21, 0
      %p48 = por %p46, %p47
      %s49 = ssub.s32 %s15, %s22
      %p50 = scmp.eq.s32.totalorder %s49, 0
      %s52 = sadd.s32 %s51, 1
      %s53 = scalar_select %p50, %s51, %s52
      %p56 = pneg %p50
      %p57 = scmp.eq.s32.totalorder %s15, 1
      %p58 = por %p56, %p57
      %p59 = scmp.ne.s32.totalorder %s51, %s54
      %p60 = scmp.eq.s32.totalorder %s15, 0
      %p61 = por %p59, %p60
      %p62 = scmp.ne.s32.totalorder %s51, %s54
      %p63 = scmp.eq.s32.totalorder %s20, 1
      %p64 = por %p62, %p63
      %p65 = scmp.ne.s32.totalorder %s54, %s55
      %p66 = scmp.eq.s32.totalorder %s20, 0
      %p67 = por %p65, %p66
      %p68 = scmp.ne.s32.totalorder %s54, %s55
      %p69 = scmp.eq.s32.totalorder %s21, 1
      %p70 = por %p68, %p69
      %p72 = scmp.ne.s32.totalorder %s55, %s71
      %p73 = scmp.eq.s32.totalorder %s21, 0
      %p74 = por %p72, %p73
      %s75 = ssub.s32 %s15, %s22
      %p76 = scmp.eq.s32.totalorder %s75, 0
      %s78 = sadd.s32 %s77, 1
      %s79 = scalar_select %p76, %s77, %s78
      %p82 = pneg %p76
      %p83 = scmp.eq.s32.totalorder %s15, 1
      %p84 = por %p82, %p83
      %p85 = scmp.ne.s32.totalorder %s77, %s80
      %p86 = scmp.eq.s32.totalorder %s15, 0
      %p87 = por %p85, %p86
      %p88 = scmp.ne.s32.totalorder %s77, %s80
      %p89 = scmp.eq.s32.totalorder %s20, 1
      %p90 = por %p88, %p89
      %p91 = scmp.ne.s32.totalorder %s80, %s81
      %p92 = scmp.eq.s32.totalorder %s20, 0
      %p93 = por %p91, %p92
      %p94 = scmp.ne.s32.totalorder %s80, %s81
      %p95 = scmp.eq.s32.totalorder %s21, 1
      %p96 = por %p94, %p95
      %p98 = scmp.ne.s32.totalorder %s81, %s97
      %p99 = scmp.eq.s32.totalorder %s21, 0
      %p100 = por %p98, %p99
      %s101 = ssub.s32 %s15, %s22
      %p102 = scmp.eq.s32.totalorder %s101, 0
      %s104 = sadd.s32 %s103, 1
      %s105 = scalar_select %p102, %s103, %s104
      %p108 = pneg %p102
      %p109 = scmp.eq.s32.totalorder %s15, 1
      %p110 = por %p108, %p109
      %p111 = scmp.ne.s32.totalorder %s103, %s106
      %p112 = scmp.eq.s32.totalorder %s15, 0
      %p113 = por %p111, %p112
      %p114 = scmp.ne.s32.totalorder %s103, %s106
      %p115 = scmp.eq.s32.totalorder %s20, 1
      %p116 = por %p114, %p115
      %p117 = scmp.ne.s32.totalorder %s106, %s107
      %p118 = scmp.eq.s32.totalorder %s20, 0
      %p119 = por %p117, %p118
      %p120 = scmp.ne.s32.totalorder %s106, %s107
      %p121 = scmp.eq.s32.totalorder %s21, 1
      %p122 = por %p120, %p121
      %p124 = scmp.ne.s32.totalorder %s107, %s123
      %p125 = scmp.eq.s32.totalorder %s21, 0
      %p126 = por %p124, %p125
      %p127 = scmp.le.s32.totalorder 1, %s15
      %p128 = scmp.lt.s32.totalorder %s15, 3
      %p129 = pnand %p127, %p128
      %p130 = pneg %p129
      // Predicated region
      $region9: #{tpu_custom_call.1} parent=5 // pred_check
        _
      $region10: #{tpu_custom_call.1} parent=5 // pred_check_branch
        %132 = sbr.rel (%p129) target = $region12
      $region11: #{tpu_custom_call.1} parent=5 // pred_region
        %s133 = ssub.s32 %s15, 1
      $region12: #{tpu_custom_call.1} parent=5 // pred_fallthru
        _
      %p134 = scmp.lt.s32.totalorder %s15, 2
      // Predicated region
      $region13: #{tpu_custom_call.1} parent=5 // pred_check
        %p135 = pneg %p134
      $region14: #{tpu_custom_call.1} parent=5 // pred_check_branch
        %137 = sbr.rel (%p135) target = $region16
      $region15: #{tpu_custom_call.1} parent=5 // pred_region
        // Predicated region
        $region17: #{tpu_custom_call.1} parent=15 // pred_check
          %p138 = pneg %p35
        $region18: #{tpu_custom_call.1} parent=15 // pred_check_branch
          %140 = sbr.rel (%p138) target = $region20
        $region19: #{tpu_custom_call.1} parent=15 // pred_region
          %s141 = sand.u32 %s25, 1
          %s142 = scalar_lea.sflag [#allocation4], %s141
          %s143 = sand.u32 %s25, 1
          %s144 = smul.addr %s143, 24
          %s145 = scalar_lea.vmem [#allocation3], %s144
          %147 = vsyncadd %s142, 0
          %s148 = smul.addr %s15, 3
          %s149 = smul.addr %s148, 8
          %s150 = scalar_lea.hbm %s0, %s149
          %s152 = sshll.u32 %s150, 4
          %s153 = int_to_ptr.hbm [resolvable:$true] %s152
          %s154 = sshll.u32 %s145, 4
          %s155 = int_to_ptr.vmem [resolvable:$true] %s154
          %157 = dma.hbm_to_vmem [thread:$0]  %s153, 384, %s155, %s142
        $region20: #{tpu_custom_call.1} parent=15 // pred_fallthru
          _
        // Predicated region
        $region21: #{tpu_custom_call.1} parent=15 // pred_check
          %p158 = pneg %p61
        $region22: #{tpu_custom_call.1} parent=15 // pred_check_branch
          %160 = sbr.rel (%p158) target = $region24
        $region23: #{tpu_custom_call.1} parent=15 // pred_region
          %p161 = scmp.lt.s32.totalorder %s15, 1
          %s162 = scalar_select %p161, %s15, 1
          %s163 = smul.addr %s162, 8
          %s164 = scalar_lea.vmem %s1, %s163
        $region24: #{tpu_custom_call.1} parent=15 // pred_fallthru
          _
        // Predicated region
        $region25: #{tpu_custom_call.1} parent=15 // pred_check
          %p165 = pneg %p87
        $region26: #{tpu_custom_call.1} parent=15 // pred_check_branch
          %167 = sbr.rel (%p165) target = $region28
        $region27: #{tpu_custom_call.1} parent=15 // pred_region
          %p168 = scmp.lt.s32.totalorder %s15, 1
          %s169 = scalar_select %p168, %s15, 1
          %s170 = smul.addr %s169, 8
          %s171 = scalar_lea.vmem %s2, %s170
        $region28: #{tpu_custom_call.1} parent=15 // pred_fallthru
          _
      $region16: #{tpu_custom_call.1} parent=5 // pred_fallthru
        _
      %p172 = scmp.le.s32.totalorder 1, %s15
      %p173 = scmp.lt.s32.totalorder %s15, 3
      %p174 = pnand %p172, %p173
      %p175 = pneg %p174
      // Predicated region
      $region29: #{tpu_custom_call.1} parent=5 // pred_check
        _
      $region30: #{tpu_custom_call.1} parent=5 // pred_check_branch
        %177 = sbr.rel (%p174) target = $region32
      $region31: #{tpu_custom_call.1} parent=5 // pred_region
        %s178 = ssub.s32 %s15, 1
        %s179 = sand.u32 %s28, 1
        %s180 = scalar_lea.sflag [#allocation4], %s179
        %s181 = sand.u32 %s28, 1
        %s182 = smul.addr %s181, 24
        %s183 = scalar_lea.vmem [#allocation3], %s182
        // Predicated region
        $region33: #{tpu_custom_call.1} parent=31 // pred_check
          %p184 = pneg %p41
        $region34: #{tpu_custom_call.1} parent=31 // pred_check_branch
          %186 = sbr.rel (%p184) target = $region36
        $region35: #{tpu_custom_call.1} parent=31 // pred_region
          %188 = dma.done %s180, 384
        $region36: #{tpu_custom_call.1} parent=31 // pred_fallthru
          _
        %s189 = sand.u32 %s28, 1
        %s190 = scalar_lea.sflag [#allocation4], %s189
        %s191 = sand.u32 %s28, 1
        %s192 = smul.addr %s191, 24
        %s193 = scalar_lea.vmem [#allocation3], %s192
        %p194 = pneg %p41
        %p195 = pneg %p38
        %p196 = scmp.lt.s32.totalorder %s20, 1
        %s197 = scalar_select %p196, %s20, 1
        %s198 = smul.addr %s197, 8
        %s199 = scalar_lea.vmem %s1, %s198
        %p200 = pneg %p67
        %p201 = pneg %p64
        %p202 = scmp.lt.s32.totalorder %s20, 1
        %s203 = scalar_select %p202, %s20, 1
        %s204 = smul.addr %s203, 8
        %s205 = scalar_lea.vmem %s2, %s204
        %p206 = pneg %p93
        %p207 = pneg %p90
        %p208 = pneg %p119
        %p209 = pneg %p116
        %s210 = sand.u32 %s106, 1
        %s211 = scalar_lea.sflag [#allocation5], %s210
        %s212 = sand.u32 %s106, 1
        %s213 = smul.addr %s212, 24
        %s214 = scalar_lea.vmem [#allocation6], %s213
        %p215 = scmp.lt.s32.totalorder %s20, 1
        %s216 = scalar_select %p215, %s20, 1
        %s217 = smul.addr %s216, 8
        %s218 = scalar_lea.vmem %s1, %s217
        %p219 = scmp.lt.s32.totalorder %s20, 1
        %s220 = scalar_select %p219, %s20, 1
        %s221 = smul.addr %s220, 8
        %s222 = scalar_lea.vmem %s2, %s221
        %v223 = vld [vmem:[%s183] sm:$0xff]
        %v224 = vld [vmem:[%s183 + $0x8] sm:$0xff]
        %v225 = vld [vmem:[%s183 + $0x10] sm:$0xff]
        %226 = vst [vmem:[#allocation2] sm:$0xff] %v223
        %227 = vst [vmem:[#allocation2 + $0x8] sm:$0xff] %v224
        %vm228 = vcmask 261120
        %229 = vst.msk [vmem:[#allocation2 + $0x10] sm:$0xff] %vm228, %v225
        %v230 = vld [vmem:[%s183] sm:$0xff]
        %v231 = vld [vmem:[%s183 + $0x8] sm:$0xff]
        %v232 = vld [vmem:[%s183 + $0x10] sm:$0xff]
        %236 = vrot.lane.b32.xlu0 %v230, 127
        %v237 = vpop.permute.xlu0 %236
        %238 = vrot.lane.b32.xlu0 %v231, 127
        %v239 = vpop.permute.xlu0 %238
        %240 = vrot.lane.b32.xlu0 %v232, 127
        %v241 = vpop.permute.xlu0 %240
        %vm242 = vcmask 1039360
        %v243 = vsel %vm242, %v237, %v239
        %v244 = vsel %vm242, %v239, %v241
        %248 = vst [vmem:[#allocation2 + $0x18] sm:$0xff] %v243
        %249 = vst [vmem:[#allocation2 + $0x20] sm:$0xff] %v244
        %250 = vst.msk [vmem:[#allocation2 + $0x28] sm:$0xff] %vm228, %v241
        %v251 = vld [vmem:[%s183] sm:$0xff]
        %v252 = vld [vmem:[%s183 + $0x8] sm:$0xff]
        %v253 = vld [vmem:[%s183 + $0x10] sm:$0xff]
        %257 = vrot.lane.b32.xlu0 %v251, 126
        %v258 = vpop.permute.xlu0 %257
        %259 = vrot.lane.b32.xlu0 %v252, 126
        %v260 = vpop.permute.xlu0 %259
        %261 = vrot.lane.b32.xlu0 %v253, 126
        %v262 = vpop.permute.xlu0 %261
        %vm263 = vcmask 1031168
        %v264 = vsel %vm263, %v258, %v260
        %v265 = vsel %vm263, %v260, %v262
        %269 = vst [vmem:[#allocation2 + $0x30] sm:$0xff] %v264
        %270 = vst [vmem:[#allocation2 + $0x38] sm:$0xff] %v265
        %271 = vst.msk [vmem:[#allocation2 + $0x40] sm:$0xff] %vm228, %v262
        %v272 = vld [vmem:[%s183] sm:$0xff]
        %v273 = vld [vmem:[%s183 + $0x8] sm:$0xff]
        %v274 = vld [vmem:[%s183 + $0x10] sm:$0xff]
        %278 = vrot.lane.b32.xlu0 %v272, 110
        %v279 = vpop.permute.xlu0 %278
        %280 = vrot.lane.b32.xlu0 %v273, 110
        %v281 = vpop.permute.xlu0 %280
        %282 = vrot.lane.b32.xlu0 %v274, 110
        %v283 = vpop.permute.xlu0 %282
        %vm284 = vcmask 900096
        %v285 = vsel %vm284, %v279, %v281
        %v286 = vsel %vm284, %v281, %v283
        %290 = vst [vmem:[#allocation2 + $0x48] sm:$0xff] %v285
        %291 = vst [vmem:[#allocation2 + $0x50] sm:$0xff] %v286
        %292 = vst.msk [vmem:[#allocation2 + $0x58] sm:$0xff] %vm228, %v283
        %v293 = vld [vmem:[%s183] sm:$0xff]
        %v294 = vld [vmem:[%s183 + $0x8] sm:$0xff]
        %v295 = vld [vmem:[%s183 + $0x10] sm:$0xff]
        %299 = vrot.lane.b32.xlu0 %v293, 109
        %v300 = vpop.permute.xlu0 %299
        %301 = vrot.lane.b32.xlu0 %v294, 109
        %v302 = vpop.permute.xlu0 %301
        %303 = vrot.lane.b32.xlu0 %v295, 109
        %v304 = vpop.permute.xlu0 %303
        %vm305 = vcmask 891904
        %v306 = vsel %vm305, %v300, %v302
        %v307 = vsel %vm305, %v302, %v304
        %311 = vst [vmem:[#allocation2 + $0x60] sm:$0xff] %v306
        %312 = vst [vmem:[#allocation2 + $0x68] sm:$0xff] %v307
        %313 = vst.msk [vmem:[#allocation2 + $0x70] sm:$0xff] %vm228, %v304
        %v314 = vld [vmem:[%s183] sm:$0xff]
        %v315 = vld [vmem:[%s183 + $0x8] sm:$0xff]
        %v316 = vld [vmem:[%s183 + $0x10] sm:$0xff]
        %320 = vrot.lane.b32.xlu0 %v314, 108
        %v321 = vpop.permute.xlu0 %320
        %322 = vrot.lane.b32.xlu0 %v315, 108
        %v323 = vpop.permute.xlu0 %322
        %324 = vrot.lane.b32.xlu0 %v316, 108
        %v325 = vpop.permute.xlu0 %324
        %vm326 = vcmask 883712
        %v327 = vsel %vm326, %v321, %v323
        %v328 = vsel %vm326, %v323, %v325
        %332 = vst [vmem:[#allocation2 + $0x78] sm:$0xff] %v327
        %333 = vst [vmem:[#allocation2 + $0x80] sm:$0xff] %v328
        %334 = vst.msk [vmem:[#allocation2 + $0x88] sm:$0xff] %vm228, %v325
        %v335 = vld [vmem:[%s183] sm:$0xff]
        %v336 = vld [vmem:[%s183 + $0x8] sm:$0xff]
        %v337 = vld [vmem:[%s183 + $0x10] sm:$0xff]
        %341 = vrot.lane.b32.xlu0 %v335, 92
        %v342 = vpop.permute.xlu0 %341
        %343 = vrot.lane.b32.xlu0 %v336, 92
        %v344 = vpop.permute.xlu0 %343
        %345 = vrot.lane.b32.xlu0 %v337, 92
        %v346 = vpop.permute.xlu0 %345
        %vm347 = vcmask 752640
        %v348 = vsel %vm347, %v342, %v344
        %v349 = vsel %vm347, %v344, %v346
        %353 = vst [vmem:[#allocation2 + $0x90] sm:$0xff] %v348
        %354 = vst [vmem:[#allocation2 + $0x98] sm:$0xff] %v349
        %355 = vst.msk [vmem:[#allocation2 + $0xa0] sm:$0xff] %vm228, %v346
        %v356 = vld [vmem:[%s183] sm:$0xff]
        %v357 = vld [vmem:[%s183 + $0x8] sm:$0xff]
        %v358 = vld [vmem:[%s183 + $0x10] sm:$0xff]
        %362 = vrot.lane.b32.xlu0 %v356, 91
        %v363 = vpop.permute.xlu0 %362
        %364 = vrot.lane.b32.xlu0 %v357, 91
        %v365 = vpop.permute.xlu0 %364
        %366 = vrot.lane.b32.xlu0 %v358, 91
        %v367 = vpop.permute.xlu0 %366
        %vm368 = vcmask 744448
        %v369 = vsel %vm368, %v363, %v365
        %v370 = vsel %vm368, %v365, %v367
        %374 = vst [vmem:[#allocation2 + $0xa8] sm:$0xff] %v369
        %375 = vst [vmem:[#allocation2 + $0xb0] sm:$0xff] %v370
        %376 = vst.msk [vmem:[#allocation2 + $0xb8] sm:$0xff] %vm228, %v367
        %v377 = vld [vmem:[%s183] sm:$0xff]
        %v378 = vld [vmem:[%s183 + $0x8] sm:$0xff]
        %v379 = vld [vmem:[%s183 + $0x10] sm:$0xff]
        %383 = vrot.lane.b32.xlu0 %v377, 90
        %v384 = vpop.permute.xlu0 %383
        %385 = vrot.lane.b32.xlu0 %v378, 90
        %v386 = vpop.permute.xlu0 %385
        %387 = vrot.lane.b32.xlu0 %v379, 90
        %v388 = vpop.permute.xlu0 %387
        %vm389 = vcmask 736256
        %v390 = vsel %vm389, %v384, %v386
        %v391 = vsel %vm389, %v386, %v388
        %395 = vst [vmem:[#allocation2 + $0xc0] sm:$0xff] %v390
        %396 = vst [vmem:[#allocation2 + $0xc8] sm:$0xff] %v391
        %397 = vst.msk [vmem:[#allocation2 + $0xd0] sm:$0xff] %vm228, %v388
        %v398 = vld [vmem:[%s218] sm:$0xff]
        %v399 = vld [vmem:[#allocation2] sm:$0xff]
        %v400 = vld [vmem:[#allocation2 + $0x8] sm:$0xff]
        %v401 = vld [vmem:[#allocation2 + $0x10] sm:$0xff]
        %v402 = vld [vmem:[#allocation2 + $0x18] sm:$0xff]
        %v403 = vld [vmem:[#allocation2 + $0x20] sm:$0xff]
        %v404 = vld [vmem:[#allocation2 + $0x28] sm:$0xff]
        %v405 = vld [vmem:[#allocation2 + $0x30] sm:$0xff]
        %v406 = vld [vmem:[#allocation2 + $0x38] sm:$0xff]
        %v407 = vld [vmem:[#allocation2 + $0x40] sm:$0xff]
        %v408 = vld [vmem:[#allocation2 + $0x48] sm:$0xff]
        %v409 = vld [vmem:[#allocation2 + $0x50] sm:$0xff]
        %v410 = vld [vmem:[#allocation2 + $0x58] sm:$0xff]
        %v411 = vld [vmem:[#allocation2 + $0x60] sm:$0xff]
        %v412 = vld [vmem:[#allocation2 + $0x68] sm:$0xff]
        %v413 = vld [vmem:[#allocation2 + $0x70] sm:$0xff]
        %v414 = vld [vmem:[#allocation2 + $0x78] sm:$0xff]
        %v415 = vld [vmem:[#allocation2 + $0x80] sm:$0xff]
        %v416 = vld [vmem:[#allocation2 + $0x88] sm:$0xff]
        %v417 = vld [vmem:[#allocation2 + $0x90] sm:$0xff]
        %v418 = vld [vmem:[#allocation2 + $0x98] sm:$0xff]
        %v419 = vld [vmem:[#allocation2 + $0xa0] sm:$0xff]
        %v420 = vld [vmem:[#allocation2 + $0xa8] sm:$0xff]
        %v421 = vld [vmem:[#allocation2 + $0xb0] sm:$0xff]
        %v422 = vld [vmem:[#allocation2 + $0xb8] sm:$0xff]
        %v423 = vld [vmem:[#allocation2 + $0xc0] sm:$0xff]
        %v424 = vld [vmem:[#allocation2 + $0xc8] sm:$0xff]
        %v425 = vld [vmem:[#allocation2 + $0xd0] sm:$0xff]
        %v426 = vld [vmem:[%s222] sm:$0xff]
        %428 = vset.pattern.permute.xlu0 0
        %429 = vperm.xlu0 %428, %v426
        %v430 = vpop.permute.xlu0 %429
        %vm432 = vcmask 588800
        %v434 = vsel %vm432, %v398, 0
        %436 = vmatpush.msra.mxu0 0.0
        %437 = vmatpush.msra.mxu0 0.0
        %438 = vmatpush.msra.mxu0 0.0
        %439 = vmatpush.msra.mxu0 0.0
        %440 = vmatpush.msra.mxu0 0.0
        %441 = vmatpush.msra.mxu0 0.0
        %442 = vmatpush.msra.mxu0 0.0
        %443 = vmatpush.msra.mxu0 %v423
        %444 = vmatpush.msra.mxu0 %v420
        %445 = vmatpush.msra.mxu0 %v417
        %446 = vmatpush.msra.mxu0 %v414
        %447 = vmatpush.msra.mxu0 %v411
        %448 = vmatpush.msra.mxu0 %v408
        %449 = vmatpush.msra.mxu0 %v405
        %450 = vmatpush.msra.mxu0 %v402
        %451 = vmatpush.msra.mxu0 %v399
        %452 = vmatmul.f32.gmra.mxu0 %v434
        %v453 = vpop.f32.mrf.mxu0
        %v454 = vadd.f32 %v430, %v453
        %455 = vdwg.mxu0
        %456 = vmatpush.msra.mxu0 0.0
        %457 = vmatpush.msra.mxu0 0.0
        %458 = vmatpush.msra.mxu0 0.0
        %459 = vmatpush.msra.mxu0 0.0
        %460 = vmatpush.msra.mxu0 0.0
        %461 = vmatpush.msra.mxu0 0.0
        %462 = vmatpush.msra.mxu0 0.0
        %463 = vmatpush.msra.mxu0 %v424
        %464 = vmatpush.msra.mxu0 %v421
        %465 = vmatpush.msra.mxu0 %v418
        %466 = vmatpush.msra.mxu0 %v415
        %467 = vmatpush.msra.mxu0 %v412
        %468 = vmatpush.msra.mxu0 %v409
        %469 = vmatpush.msra.mxu0 %v406
        %470 = vmatpush.msra.mxu0 %v403
        %471 = vmatpush.msra.mxu0 %v400
        %472 = vmatmul.f32.gmra.mxu0 %v434
        %v473 = vpop.f32.mrf.mxu0
        %v474 = vadd.f32 %v430, %v473
        %475 = vdwg.mxu0
        %476 = vmatpush.msra.mxu0 0.0
        %477 = vmatpush.msra.mxu0 0.0
        %478 = vmatpush.msra.mxu0 0.0
        %479 = vmatpush.msra.mxu0 0.0
        %480 = vmatpush.msra.mxu0 0.0
        %481 = vmatpush.msra.mxu0 0.0
        %482 = vmatpush.msra.mxu0 0.0
        %483 = vmatpush.msra.mxu0 %v425
        %484 = vmatpush.msra.mxu0 %v422
        %485 = vmatpush.msra.mxu0 %v419
        %486 = vmatpush.msra.mxu0 %v416
        %487 = vmatpush.msra.mxu0 %v413
        %488 = vmatpush.msra.mxu0 %v410
        %489 = vmatpush.msra.mxu0 %v407
        %490 = vmatpush.msra.mxu0 %v404
        %491 = vmatpush.msra.mxu0 %v401
        %492 = vmatmul.f32.gmra.mxu0 %v434
        %v493 = vpop.f32.mrf.mxu0
        %v494 = vadd.f32 %v430, %v493
        %495 = vdwg.mxu0
        %496 = vst [vmem:[%s214] sm:$0xff] %v454
        %497 = vst [vmem:[%s214 + $0x8] sm:$0xff] %v474
        %498 = vst.msk [vmem:[%s214 + $0x10] sm:$0xff] %vm228, %v494
        %s499 = sand.u32 %s106, 1
        %s500 = scalar_lea.sflag [#allocation5], %s499
        %s501 = sand.u32 %s106, 1
        %s502 = smul.addr %s501, 24
        %s503 = scalar_lea.vmem [#allocation6], %s502
        // Predicated region
        $region37: #{tpu_custom_call.1} parent=31 // pred_check
          %p504 = pneg %p116
        $region38: #{tpu_custom_call.1} parent=31 // pred_check_branch
          %506 = sbr.rel (%p504) target = $region40
        $region39: #{tpu_custom_call.1} parent=31 // pred_region
          %508 = vsyncadd %s500, 0
          %s509 = smul.addr %s20, 3
          %s510 = smul.addr %s509, 8
          %s511 = scalar_lea.hbm %s3, %s510
          %s513 = sshll.u32 %s503, 4
          %s514 = int_to_ptr.vmem [resolvable:$true] %s513
          %s515 = sshll.u32 %s511, 4
          %s516 = int_to_ptr.hbm [resolvable:$true] %s515
          %518 = dma.vmem_to_hbm [thread:$0]  %s514, 384, %s516, %s500
        $region40: #{tpu_custom_call.1} parent=31 // pred_fallthru
          _
      $region32: #{tpu_custom_call.1} parent=5 // pred_fallthru
        _
      %p519 = scmp.le.s32.totalorder 2, %s15
      // Predicated region
      $region41: #{tpu_custom_call.1} parent=5 // pred_check
        %p520 = pneg %p519
      $region42: #{tpu_custom_call.1} parent=5 // pred_check_branch
        %522 = sbr.rel (%p520) target = $region44
      $region43: #{tpu_custom_call.1} parent=5 // pred_region
        %s523 = ssub.s32 %s15, 2
        // Predicated region
        $region45: #{tpu_custom_call.1} parent=43 // pred_check
          %p524 = pneg %p122
        $region46: #{tpu_custom_call.1} parent=43 // pred_check_branch
          %526 = sbr.rel (%p524) target = $region48
        $region47: #{tpu_custom_call.1} parent=43 // pred_region
          %s527 = sand.u32 %s107, 1
          %s528 = scalar_lea.sflag [#allocation5], %s527
          %s529 = sand.u32 %s107, 1
          %s530 = smul.addr %s529, 24
          %s531 = scalar_lea.vmem [#allocation6], %s530
          %533 = dma.done %s528, 384
        $region48: #{tpu_custom_call.1} parent=43 // pred_fallthru
          _
      $region44: #{tpu_custom_call.1} parent=5 // pred_fallthru
        _
    $region6: #{tpu_custom_call.1} parent=1 // loop_footer
      %s19 = sadd.s32 1, %s15
    $region7: #{tpu_custom_call.1} parent=1 // loop_footer_branch
      %14 = sbr.rel target = $region3
    $region8: #{tpu_custom_call.1} parent=1 // loop_exit
      _
    %534 = vsyncpa [#allocation4], 1
    %s535 = scalar_lea.sflag [#allocation4], 1
    %536 = vsyncpa %s535, 1
    %537 = vsyncpa [#allocation5], 1
    %s538 = scalar_lea.sflag [#allocation5], 1
    %539 = vsyncpa %s538, 1

</llo_original>
